<compile_context>
chip_gen: v5e
topology: v5e:2x2
jax: 0.10.0
libtpu: 0.0.40
codegen_flags: <defaults>
</compile_context>

<pallas_src>
import functools

import jax
import jax.numpy as jnp
from jax import lax
from jax.experimental import pallas as pl
from jax.experimental.pallas import tpu as pltpu


def _tpu_defaults():
    """Per-generation (num_cores, input_buffer_budget_bytes, vmem_limit_bytes)."""
    kind = ""
    try:
        kind = jax.devices()[0].device_kind.lower()
    except Exception:
        pass
    if "v7" in kind:
        # 2 TensorCores/chip, 64 MiB VMEM per TC: keep double-buffered inputs
        # near 32 MiB and the scoped limit well under physical VMEM.
        return 2, 32 * 1024 * 1024, 48 << 20
    if "v6" in kind or "v5" in kind:
        # Single TC, 128 MiB physical VMEM; raise the (small) default scoped
        # limit and use large streaming tiles.
        return 1, 64 * 1024 * 1024, 96 << 20
    # Unknown chip: conservative budget, leave the default scoped limit alone.
    return 1, 10 * 1024 * 1024, None


def _pick_block_b(B, T, itemsize, budget_bytes, sub):
    """Largest batch tile s.t. 2 inputs x 2 pipeline buffers fit in budget."""
    tb = budget_bytes // max(1, 4 * T * itemsize)
    tb = max(sub, (int(tb) // sub) * sub)        # dtype-native sublane multiple
    if tb >= B:
        return B                                  # whole batch in one block
    return tb


def _neg_pear_kernel(preds_ref, labels_ref, out_ref, *,
                     B, T, TB, tiles_total, tiles_per_core, ragged, has_dups):
    c = pl.program_id(0)                          # core / parallel axis
    t = pl.program_id(1)                          # batch-tile (reduction) axis
    gtile = c * tiles_per_core + t                # global batch-tile index

    # Output block (c, 0) is resident across the t axis -> accumulate into it.
    @pl.when(t == 0)
    def _():
        out_ref[...] = jnp.zeros_like(out_ref)

    def _tile_body():
        x = preds_ref[...].astype(jnp.float32)    # (TB, T)
        y = labels_ref[...].astype(jnp.float32)   # (TB, T)
        inv_t = jnp.float32(1.0 / T)

        # hoisted elementwise temporaries (3 VPU muls / elem)
        xy = x * y
        xx = x * x
        yy = y * y

        # per-row reductions (cross-lane, XLU)
        sum_x = jnp.sum(x, axis=1, keepdims=True)      # (TB, 1)
        sum_y = jnp.sum(y, axis=1, keepdims=True)      # (TB, 1)
        sum_xy = jnp.sum(xy, axis=1, keepdims=True)    # (TB, 1)

        # Fold T into per-row scalars:  rsqrt(T^2 * A) == rsqrt(A) / T, so
        #   num * rsqrt((T*xx - sx2)*(T*yy - sy2))
        # == (num/T) * rsqrt((xx - sx2/T)*(yy - sy2/T)).
        a = (sum_x * sum_x) * inv_t                    # sum_x^2 / T  (TB, 1)
        b = (sum_y * sum_y) * inv_t                    # sum_y^2 / T  (TB, 1)
        num_t = sum_xy - (sum_x * sum_y) * inv_t       # num / T      (TB, 1)

        # Faithful to PyTorch: xx / yy are NOT reduced, so den is (TB, T).
        den = (xx - a) * (yy - b)                      # (TB, T)
        contrib = num_t * lax.rsqrt(den)               # (TB, T), EUP rsqrt

        def _acc(v):
            out_ref[...] += jnp.sum(v, axis=0, keepdims=True)   # (1, T)

        if ragged:
            last = tiles_total - 1

            @pl.when(gtile < last)                 # full tiles: no mask
            def _():
                _acc(contrib)

            @pl.when(gtile == last)                # last tile: mask padded rows
            def _():
                rows_last = B - last * TB
                valid = (lax.broadcasted_iota(jnp.int32, (TB, 1), 0)
                         < rows_last)              # (TB, 1), broadcast in where
                _acc(jnp.where(valid, contrib, 0.0))
        else:
            _acc(contrib)

    if has_dups:
        # Skip clamped duplicate tiles on the last parallel core.
        pl.when(gtile < tiles_total)(_tile_body)
    else:
        _tile_body()


def neg_pear_loss(preds, labels, *, block_b=None, num_cores=None,
                  vmem_limit_bytes=None):
    """Pallas version of the PyTorch neg_pear_loss.forward.

    preds, labels: (B, T) arrays. Returns a (T,) array (matching the PyTorch
    module's broadcasting behavior, NaNs included).
    """
    assert preds.shape == labels.shape and preds.ndim == 2
    B, T = preds.shape
    itemsize = jnp.dtype(preds.dtype).itemsize
    sub = max(8, 32 // max(1, itemsize))       # 8 f32 / 16 bf16 / 32 int8

    auto_nc, budget_bytes, auto_vmem = _tpu_defaults()
    nc_req = auto_nc if num_cores is None else int(num_cores)
    if vmem_limit_bytes is None:
        vmem_limit_bytes = auto_vmem

    # TODO(synk): for extremely wide T where even a (sub, T) tile exceeds the
    # VMEM budget, a two-pass structure (per-row sums first, elementwise
    # second) is needed.
    if block_b is None:
        TB = _pick_block_b(B, T, itemsize, budget_bytes, sub)
    else:
        TB = int(block_b)
        if TB >= B:
            TB = B
        elif TB % sub != 0:
            TB = max(sub, (TB // sub) * sub)
            if TB >= B:
                TB = B

    tiles_total = pl.cdiv(B, TB)
    nc = max(1, min(nc_req, tiles_total))      # v7x: 2 TCs; v5e/v6e: serial
    tiles_per_core = pl.cdiv(tiles_total, nc)
    has_dups = nc * tiles_per_core > tiles_total
    ragged = (B % TB) != 0

    if has_dups:
        def in_map(c, t):
            # Clamp so duplicate tiles assigned to the last core stay
            # in-bounds; they are skipped inside the kernel.
            return (jnp.minimum(c * tiles_per_core + t, tiles_total - 1), 0)
    else:
        def in_map(c, t):
            return (c * tiles_per_core + t, 0)

    kernel = functools.partial(
        _neg_pear_kernel, B=B, T=T, TB=TB, tiles_total=tiles_total,
        tiles_per_core=tiles_per_core, ragged=ragged, has_dups=has_dups)

    partials = pl.pallas_call(
        kernel,
        out_shape=jax.ShapeDtypeStruct((nc, T), jnp.float32),
        grid_spec=pltpu.PrefetchScalarGridSpec(
            num_scalar_prefetch=0,
            grid=(nc, tiles_per_core),
            in_specs=[
                pl.BlockSpec((TB, T), in_map),
                pl.BlockSpec((TB, T), in_map),
            ],
            out_specs=pl.BlockSpec((1, T), lambda c, t: (c, 0)),
        ),
        compiler_params=pltpu.CompilerParams(
            dimension_semantics=("parallel", "arbitrary"),
            vmem_limit_bytes=vmem_limit_bytes,
        ),
    )(preds, labels)

    # loss_j = (1/B) * sum_i (1 - c_ij) = 1 - (sum_i c_ij) / B
    loss = 1.0 - jnp.sum(partials, axis=0) / jnp.float32(B)   # (T,)
    return loss.astype(preds.dtype)


def neg_pear_loss_ref(preds, labels):
    """Pure-JAX transcription of the PyTorch forward, for verification."""
    B, T = preds.shape
    loss = 0.0
    for i in range(B):
        sum_x = jnp.sum(preds[i])
        sum_y = jnp.sum(labels[i])
        sum_xy = jnp.sum(preds[i] * labels[i])
        sum_x_sq = preds[i] ** 2
        sum_y_sq = labels[i] ** 2
        t = T
        num = t * sum_xy - sum_x * sum_y
        den = jnp.sqrt((t * sum_x_sq - sum_x ** 2) * (t * sum_y_sq - sum_y ** 2))
        loss = loss + (1.0 - num / den)
    return loss / B


if __name__ == "__main__":
    key = jax.random.PRNGKey(0)
    k1, k2, k3, k4, k5, k6 = jax.random.split(key, 6)

    # Case 1: small shape, auto tile -> single batch tile, single core.
    B1, T1 = 8, 128
    p1 = jax.random.normal(k1, (B1, T1), dtype=jnp.float32)
    l1 = jax.random.normal(k2, (B1, T1), dtype=jnp.float32)
    out1 = jax.block_until_ready(neg_pear_loss(p1, l1))
    ref1 = neg_pear_loss_ref(p1, l1)
    assert out1.shape == (T1,)
    # NaNs are expected wherever the sqrt argument is negative (faithful to
    # the PyTorch module), so compare with equal_nan.
    assert bool(jnp.allclose(out1, ref1, rtol=1e-4, atol=1e-4, equal_nan=True))

    # Case 2: multi-tile batch with ragged last tile — exercises the
    # parallel-core split (on v7x), the tile-index clamp / duplicate-tile
    # skip, and the last-tile row masking.
    B2, T2 = 20, 256
    p2 = jax.random.normal(k3, (B2, T2), dtype=jnp.float32)
    l2 = jax.random.normal(k4, (B2, T2), dtype=jnp.float32)
    out2 = jax.block_until_ready(neg_pear_loss(p2, l2, block_b=8))
    ref2 = neg_pear_loss_ref(p2, l2)
    assert out2.shape == (T2,)
    assert bool(jnp.allclose(out2, ref2, rtol=1e-4, atol=1e-4, equal_nan=True))

    # Case 3: multi-tile, non-ragged — exercises the unmasked streaming path
    # across several grid steps.
    B3, T3 = 32, 128
    p3 = jax.random.normal(k5, (B3, T3), dtype=jnp.float32)
    l3 = jax.random.normal(k6, (B3, T3), dtype=jnp.float32)
    out3 = jax.block_until_ready(neg_pear_loss(p3, l3, block_b=8))
    ref3 = neg_pear_loss_ref(p3, l3)
    assert out3.shape == (T3,)
    assert bool(jnp.allclose(out3, ref3, rtol=1e-4, atol=1e-4, equal_nan=True))

    print("KERNEL_OK")
</pallas_src>

<mosaic_0001>
module attributes {stable_mosaic.version = 11 : i64} {
  func.func @_neg_pear_kernel(%arg0: i32, %arg1: i32, %arg2: memref<8x128xf32, #tpu.memory_space<vmem>>, %arg3: memref<8x128xf32, #tpu.memory_space<vmem>>, %arg4: memref<1x128xf32, #tpu.memory_space<vmem>>) attributes {dimension_semantics = [#tpu.dimension_semantics<parallel>, #tpu.dimension_semantics<arbitrary>], iteration_bounds = array<i64: 1, 1>, scalar_prefetch = 0 : i64, scratch_operands = 0 : i64, tpu.core_type = #tpu.core_type<tc>, window_params = [{transform_indices = @transform_0, window_bounds = array<i64: 8, 128>}, {transform_indices = @transform_1, window_bounds = array<i64: 8, 128>}, {transform_indices = @transform_2, window_bounds = array<i64: 1, 128>}]} {
    %c0_i32 = arith.constant 0 : i32
    %0 = arith.cmpi eq, %arg1, %c0_i32 : i32
    %1 = arith.extui %0 : i1 to i32
    %c0_i32_0 = arith.constant 0 : i32
    %2 = arith.cmpi ne, %1, %c0_i32_0 : i32
    scf.if %2 {
      %cst_14 = arith.constant 0.000000e+00 : f32
      %37 = vector.broadcast %cst_14 : f32 to vector<1x128xf32>
      %c0_15 = arith.constant 0 : index
      %c0_16 = arith.constant 0 : index
      %38 = vector.load %arg4[%c0_15, %c0_16] : memref<1x128xf32, #tpu.memory_space<vmem>>, vector<1x128xf32>
      tpu.vector_store %arg4[%c0_15, %c0_16], %37 {strides = array<i32>} : memref<1x128xf32, #tpu.memory_space<vmem>>, vector<1x128xf32>,
    } else {
    }
    %c0 = arith.constant 0 : index
    %c0_1 = arith.constant 0 : index
    %3 = vector.load %arg2[%c0, %c0_1] : memref<8x128xf32, #tpu.memory_space<vmem>>, vector<8x128xf32>
    %c0_2 = arith.constant 0 : index
    %c0_3 = arith.constant 0 : index
    %4 = vector.load %arg3[%c0_2, %c0_3] : memref<8x128xf32, #tpu.memory_space<vmem>>, vector<8x128xf32>
    %5 = arith.mulf %3, %4 : vector<8x128xf32>
    %6 = arith.mulf %3, %3 : vector<8x128xf32>
    %7 = arith.mulf %4, %4 : vector<8x128xf32>
    %cst = arith.constant dense<0.000000e+00> : vector<8xf32>
    %8 = vector.multi_reduction <add>, %3, %cst [1] : vector<8x128xf32> to vector<8xf32>
    %9 = vector.shape_cast %8 : vector<8xf32> to vector<8x1xf32>
    %cst_4 = arith.constant dense<0.000000e+00> : vector<8xf32>
    %10 = vector.multi_reduction <add>, %4, %cst_4 [1] : vector<8x128xf32> to vector<8xf32>
    %11 = vector.shape_cast %10 : vector<8xf32> to vector<8x1xf32>
    %cst_5 = arith.constant dense<0.000000e+00> : vector<8xf32>
    %12 = vector.multi_reduction <add>, %5, %cst_5 [1] : vector<8x128xf32> to vector<8xf32>
    %13 = vector.shape_cast %12 : vector<8xf32> to vector<8x1xf32>
    %14 = arith.mulf %9, %9 : vector<8x1xf32>
    %cst_6 = arith.constant 7.812500e-03 : f32
    %15 = vector.broadcast %cst_6 : f32 to vector<8x1xf32>
    %16 = arith.mulf %14, %15 : vector<8x1xf32>
    %17 = arith.mulf %11, %11 : vector<8x1xf32>
    %cst_7 = arith.constant 7.812500e-03 : f32
    %18 = vector.broadcast %cst_7 : f32 to vector<8x1xf32>
    %19 = arith.mulf %17, %18 : vector<8x1xf32>
    %20 = arith.mulf %9, %11 : vector<8x1xf32>
    %cst_8 = arith.constant 7.812500e-03 : f32
    %21 = vector.broadcast %cst_8 : f32 to vector<8x1xf32>
    %22 = arith.mulf %20, %21 : vector<8x1xf32>
    %23 = arith.subf %13, %22 : vector<8x1xf32>
    %24 = vector.broadcast %16 : vector<8x1xf32> to vector<8x128xf32>
    %25 = arith.subf %6, %24 : vector<8x128xf32>
    %26 = vector.broadcast %19 : vector<8x1xf32> to vector<8x128xf32>
    %27 = arith.subf %7, %26 : vector<8x128xf32>
    %28 = arith.mulf %25, %27 : vector<8x128xf32>
    %29 = math.rsqrt %28 : vector<8x128xf32>
    %30 = vector.broadcast %23 : vector<8x1xf32> to vector<8x128xf32>
    %31 = arith.mulf %30, %29 : vector<8x128xf32>
    %c0_9 = arith.constant 0 : index
    %c0_10 = arith.constant 0 : index
    %32 = vector.load %arg4[%c0_9, %c0_10] : memref<1x128xf32, #tpu.memory_space<vmem>>, vector<1x128xf32>
    %cst_11 = arith.constant dense<0.000000e+00> : vector<128xf32>
    %33 = vector.multi_reduction <add>, %31, %cst_11 [0] : vector<8x128xf32> to vector<128xf32>
    %34 = vector.shape_cast %33 : vector<128xf32> to vector<1x128xf32>
    %35 = arith.addf %32, %34 : vector<1x128xf32>
    %c0_12 = arith.constant 0 : index
    %c0_13 = arith.constant 0 : index
    %36 = vector.load %arg4[%c0_12, %c0_13] : memref<1x128xf32, #tpu.memory_space<vmem>>, vector<1x128xf32>
    tpu.vector_store %arg4[%c0_12, %c0_13], %35 {strides = array<i32>} : memref<1x128xf32, #tpu.memory_space<vmem>>, vector<1x128xf32>,
    return
  }
  func.func @transform_0(%arg0: i32, %arg1: i32) -> (i32, i32) {
    %c1_i32 = arith.constant 1 : i32
    %0 = arith.muli %arg0, %c1_i32 : i32
    %1 = arith.addi %0, %arg1 : i32
    %c0_i32 = arith.constant 0 : i32
    %c0_i32_0 = arith.constant 0 : i32
    return %1, %c0_i32 : i32, i32
  }
  func.func @transform_1(%arg0: i32, %arg1: i32) -> (i32, i32) {
    %c1_i32 = arith.constant 1 : i32
    %0 = arith.muli %arg0, %c1_i32 : i32
    %1 = arith.addi %0, %arg1 : i32
    %c0_i32 = arith.constant 0 : i32
    %c0_i32_0 = arith.constant 0 : i32
    return %1, %c0_i32 : i32, i32
  }
  func.func @transform_2(%arg0: i32, %arg1: i32) -> (i32, i32) {
    %c0_i32 = arith.constant 0 : i32
    %c0_i32_0 = arith.constant 0 : i32
    return %arg0, %c0_i32 : i32, i32
  }
}

</mosaic_0001>

<llo_original>
// kernel: tpu_custom_call.1
$region0: #{tpu_custom_call.1}
  #allocation0 [shape = 'u32[]', space=smem, size = 0x4, offset = 0x4, fixed_abs, tag = 'smem constant byte address 0x4 - core index']
  #allocation1 [shape = 'u32[72,128]{1,0:T(1,128)}', space=vmem, size = 0x9000, scoped, tag = 'internal scratch']
  %s0 = inlined_call_operand.hbm [shape: f32[8,128], index: 0, kind: input, shape index: {}]
  %s1 = inlined_call_operand.hbm [shape: f32[8,128], index: 1, kind: input, shape index: {}]
  %s2 = inlined_call_operand.hbm [shape: f32[1,128], index: 2, kind: output, shape index: {}]
  %s3 = sld [smem:[#allocation0]]
  $region30: #{tpu_custom_call.1} parent=0
    _
  %s5 = ssub.s32 1, %s3
  %s6 = scalar_select 0, %s5, %s3
  $region1: #{tpu_custom_call.1} parent=0
    #allocation2 [shape = 'u8[4096]{0}', space=vmem, size = 0x1000, scoped, tag = 'input window, operand 0, single buffered']
    #allocation3 [shape = 's32[1]{0}', space=sflag, size = 0x4, scoped, tag = 'scoped memory for tpu_custom_call.1']
    #allocation4 [shape = 's32[1]{0}', space=sflag, size = 0x4, scoped, tag = 'scoped memory for tpu_custom_call.1']
    #allocation5 [shape = 'u8[4096]{0}', space=vmem, size = 0x1000, scoped, tag = 'input window, operand 1, single buffered']
    #allocation6 [shape = 's32[1]{0}', space=sflag, size = 0x4, scoped, tag = 'scoped memory for tpu_custom_call.1']
    #allocation7 [shape = 'u8[512]{0}', space=vmem, size = 0x400, scoped, tag = 'output window, operand 0, single buffered']
    %7 = vsyncpa [#allocation3], 0
    %8 = vsyncpa [#allocation6], 0
    %9 = vsyncpa [#allocation4], 0
    // Predicated region
    $region2: #{tpu_custom_call.1} parent=1 // pred_check
      _
    $region3: #{tpu_custom_call.1} parent=1 // pred_check_branch
      %11 = sbr.rel (0) target = $region5
    $region4: #{tpu_custom_call.1} parent=1 // pred_region
      %s12 = sadd.s32 0, 0
      %14 = vsyncadd [#allocation3], 0
      %s15 = smul.addr %s12, 8
      %s16 = scalar_lea.hbm %s0, %s15
      %s18 = sshll.u32 %s16, 4
      %s19 = int_to_ptr.hbm [resolvable:$true] %s18
      %s20 = sshll.u32 [#allocation2], 4
      %s21 = int_to_ptr.vmem [resolvable:$true] %s20
      %23 = dma.hbm_to_vmem [thread:$0]  %s19, 128, %s21, [#allocation3]
    $region5: #{tpu_custom_call.1} parent=1 // pred_fallthru
      _
    // Predicated region
    $region6: #{tpu_custom_call.1} parent=1 // pred_check
      _
    $region7: #{tpu_custom_call.1} parent=1 // pred_check_branch
      %25 = sbr.rel (0) target = $region9
    $region8: #{tpu_custom_call.1} parent=1 // pred_region
      %s26 = sadd.s32 0, 0
      %28 = vsyncadd [#allocation6], 0
      %s29 = smul.addr %s26, 8
      %s30 = scalar_lea.hbm %s1, %s29
      %s32 = sshll.u32 %s30, 4
      %s33 = int_to_ptr.hbm [resolvable:$true] %s32
      %s34 = sshll.u32 [#allocation5], 4
      %s35 = int_to_ptr.vmem [resolvable:$true] %s34
      %37 = dma.hbm_to_vmem [thread:$0]  %s33, 128, %s35, [#allocation6]
    $region9: #{tpu_custom_call.1} parent=1 // pred_fallthru
      _
    // Predicated region
    $region10: #{tpu_custom_call.1} parent=1 // pred_check
      _
    $region11: #{tpu_custom_call.1} parent=1 // pred_check_branch
      %39 = sbr.rel (0) target = $region13
    $region12: #{tpu_custom_call.1} parent=1 // pred_region
      %41 = dma.done [#allocation3], 128
    $region13: #{tpu_custom_call.1} parent=1 // pred_fallthru
      _
    // Predicated region
    $region14: #{tpu_custom_call.1} parent=1 // pred_check
      _
    $region15: #{tpu_custom_call.1} parent=1 // pred_check_branch
      %43 = sbr.rel (0) target = $region17
    $region16: #{tpu_custom_call.1} parent=1 // pred_region
      %45 = dma.done [#allocation6], 128
    $region17: #{tpu_custom_call.1} parent=1 // pred_fallthru
      _
    %s46 = sadd.s32 0, 0
    %s47 = sadd.s32 0, 0
    %p48 = scmp.eq.s32.totalorder 0, 0
    // Predicated region
    $region18: #{tpu_custom_call.1} parent=1 // pred_check
      %p49 = pneg %p48
    $region19: #{tpu_custom_call.1} parent=1 // pred_check_branch
      %51 = sbr.rel (%p49) target = $region21
    $region20: #{tpu_custom_call.1} parent=1 // pred_region
      %52 = vst [vmem:[#allocation7] sm:$0x1] 0.0
    $region21: #{tpu_custom_call.1} parent=1 // pred_fallthru
      _
    %v53 = vld [vmem:[#allocation2] sm:$0xff]
    %v54 = vld [vmem:[#allocation5] sm:$0xff]
    %v55 = vmul.f32 %v53, %v54
    %v56 = vmul.f32 %v53, %v53
    %v57 = vmul.f32 %v54, %v54
    %58 = vadd.xlane.f32.xlu0 %v53
    %v59 = vpop.xlane.xlu0 %58
    %60 = vadd.xlane.f32.xlu0 %v54
    %v61 = vpop.xlane.xlu0 %60
    %62 = vadd.xlane.f32.xlu0 %v55
    %v63 = vpop.xlane.xlu0 %62
    %v64 = vmul.f32 %v59, %v59
    %v65 = vmul.f32 %v64, 0.0078125
    %v66 = vmul.f32 %v61, %v61
    %v67 = vmul.f32 %v66, 0.0078125
    %v68 = vmul.f32 %v59, %v61
    %v69 = vmul.f32 %v68, 0.0078125
    %v70 = vsub.f32 %v63, %v69
    %v71 = vsub.f32 %v56, %v65
    %v72 = vsub.f32 %v57, %v67
    %v73 = vmul.f32 %v71, %v72
    %v74 = vrsqrt.pop %v73
    %v75 = vmul.f32 %v74, %v73
    %v76 = vmul.f32 %v75, %v74
    %v77 = vmul.f32 0.5, %v76
    %v78 = vsub.f32 1.5, %v77
    %v79 = vmul.f32 %v74, %v78
    %vm80 = vweird.f32 %v73
    %vm81 = vweird.f32 %v74
    %vm82 = vmor %vm80, %vm81
    %v83 = vsel %vm82, %v74, %v79
    %v84 = vmul.f32 %v70, %v83
    %v85 = vld [vmem:[#allocation7] sm:$0x1]
    %v86 = vrot.slane %v84, 4
    %v87 = vadd.f32 %v84, %v86
    %v88 = vrot.slane %v87, 2
    %v89 = vadd.f32 %v87, %v88
    %v90 = vrot.slane %v89, 1
    %v91 = vadd.f32 %v89, %v90
    %v92 = vadd.f32 %v85, %v91
    %93 = vst [vmem:[#allocation7] sm:$0x1] %v92
    // Predicated region
    $region22: #{tpu_custom_call.1} parent=1 // pred_check
      _
    $region23: #{tpu_custom_call.1} parent=1 // pred_check_branch
      %95 = sbr.rel (0) target = $region25
    $region24: #{tpu_custom_call.1} parent=1 // pred_region
      %97 = vsyncadd [#allocation4], 0
      %s99 = sshll.u32 [#allocation7], 4
      %s100 = int_to_ptr.vmem [resolvable:$true] %s99
      %s101 = sshll.u32 %s2, 4
      %s102 = int_to_ptr.hbm [resolvable:$true] %s101
      %104 = dma.vmem_to_hbm [thread:$0]  %s100, 16, %s102, [#allocation4]
    $region25: #{tpu_custom_call.1} parent=1 // pred_fallthru
      _
    // Predicated region
    $region26: #{tpu_custom_call.1} parent=1 // pred_check
      _
    $region27: #{tpu_custom_call.1} parent=1 // pred_check_branch
      %106 = sbr.rel (0) target = $region29
    $region28: #{tpu_custom_call.1} parent=1 // pred_region
      %108 = dma.done [#allocation4], 16
    $region29: #{tpu_custom_call.1} parent=1 // pred_fallthru
      _
    %109 = vsyncpa [#allocation3], 1
    %110 = vsyncpa [#allocation6], 1
    %111 = vsyncpa [#allocation4], 1

</llo_original>
